<compile_context>
chip_gen: v7x
topology: tpu7x:2x2x1
jax: 0.10.0
libtpu: 0.0.40
codegen_flags: <defaults>
</compile_context>

<pallas_src>
import functools

import jax
import jax.numpy as jnp
from jax.experimental import pallas as pl
from jax.experimental.pallas import tpu as pltpu


_VMEM_BUDGET = 12 * 1024 * 1024   # per-step working-set target (v5e scoped default = 16 MiB)
_MIN_PALLAS_ELEMS = 1024          # below this a pallas launch costs more than the math


def _round_up(x, m):
    return ((x + m - 1) // m) * m


# --------------------------------------------------------------------------- #
# Cross-entropy: classes on sublanes, pixels on lanes, tiled pixel axis        #
# --------------------------------------------------------------------------- #
def _ce_kernel(logits_ref, labels_ref, out_ref, acc_ref, *, hw):
    """logits_ref: (C, TP) native dtype; labels_ref: (1, TP) i32.

    Grid = (N, num_pixel_tiles).  A VMEM (1, TP) vector accumulator carries
    the per-pixel NLL sum across the pixel-tile axis ("arbitrary"); the
    per-batch partial sum is reduced once and written to out_ref on the last
    pixel tile, so the batch axis can run "parallel" (megacore on v7x).
    """
    j = pl.program_id(1)
    c, tp = logits_ref.shape

    @pl.when(j == 0)
    def _():
        acc_ref[...] = jnp.zeros_like(acc_ref)

    logits = logits_ref[...].astype(jnp.float32)                  # (C, TP)
    labels = labels_ref[...]                                      # (1, TP) i32

    # Ragged-tail mask: lanes past H*W hold clipped/garbage data.  Zero the
    # logits there so exp/log stay finite, and drop those lanes from the nll.
    lane = jax.lax.broadcasted_iota(jnp.int32, (1, tp), 1) + j * tp
    in_range = lane < hw                                          # (1, TP) bool
    logits = jnp.where(in_range, logits, 0.0)

    m = jnp.max(logits, axis=0, keepdims=True)                    # (1, TP)
    z = logits - m
    lse = jnp.log(jnp.sum(jnp.exp(z), axis=0, keepdims=True))     # (1, TP)
    cls = jax.lax.broadcasted_iota(jnp.int32, (c, tp), 0)
    tgt = jnp.sum(jnp.where(cls == labels, z, 0.0), axis=0, keepdims=True)
    # Out-of-range / ignore labels (label < 0 or label >= C) contribute zero.
    valid = jnp.logical_and(in_range,
                            jnp.logical_and(labels >= 0, labels < c))
    acc_ref[...] += jnp.where(valid, lse - tgt, 0.0)              # VPU-only per step

    @pl.when(j == pl.num_programs(1) - 1)
    def _():
        out_ref[...] = jnp.zeros_like(out_ref) + jnp.sum(acc_ref[...])


def cross_entropy_loss(logits_nchw, labels_nhw, *, max_tp=None):
    """Pixel-wise CE, mean over all N*H*W pixels (torch default, valid labels)."""
    n, c, h, w = logits_nchw.shape
    hw = h * w
    labels_i32 = labels_nhw.astype(jnp.int32)

    if logits_nchw.size < _MIN_PALLAS_ELEMS:
        # Small-head fallback: plain jnp (no kernel launch).
        lg = logits_nchw.reshape(n, c, hw).astype(jnp.float32)
        m = jnp.max(lg, axis=1, keepdims=True)
        lse = jnp.log(jnp.sum(jnp.exp(lg - m), axis=1)) + m[:, 0, :]
        lb = labels_i32.reshape(n, 1, hw)
        tgt = jnp.take_along_axis(lg, lb, axis=1)[:, 0, :]
        return jnp.mean(lse - tgt)

    # Free NCHW views: classes on the sublane axis, pixels on the lane axis.
    logits3d = logits_nchw.reshape(n, c, hw)
    labels3d = labels_i32.reshape(n, 1, hw)

    itemsize = jnp.dtype(logits_nchw.dtype).itemsize
    if max_tp is None:
        # Per-step VMEM (sublane-padded): 2 x logits buffers (~round8(C)*itemsize*TP)
        # + 2 x labels buffers (8*4*TP) + accumulator (8*4*TP).
        max_tp = _VMEM_BUDGET // (2 * _round_up(c, 8) * itemsize + 96)
    max_tp = max(128, (max_tp // 128) * 128)
    tp = hw if hw <= max_tp else max_tp
    n_tiles = pl.cdiv(hw, tp)

    grid = (n, n_tiles)
    kernel = functools.partial(_ce_kernel, hw=hw)
    out = pl.pallas_call(
        kernel,
        out_shape=jax.ShapeDtypeStruct((n, 8, 128), jnp.float32),
        grid=grid,
        in_specs=[
            pl.BlockSpec((None, c, tp), lambda i, j: (i, 0, j)),
            pl.BlockSpec((None, 1, tp), lambda i, j: (i, 0, j)),
        ],
        out_specs=pl.BlockSpec((1, 8, 128), lambda i, j: (i, 0, 0)),
        scratch_shapes=[pltpu.VMEM((1, tp), jnp.float32)],
        compiler_params=pltpu.CompilerParams(
            dimension_semantics=("parallel", "arbitrary")),
        cost_estimate=pl.CostEstimate(
            flops=int(6 * n * c * hw),
            transcendentals=int((c + 1) * n * hw),
            bytes_accessed=int(n * c * hw * itemsize + n * hw * 4
                               + n * 8 * 128 * 4)),
    )(logits3d, labels3d)
    # TODO(synk): mean divides by N*H*W (default torch CE with all-valid labels);
    # torch's ignore_index 'mean' would divide by the valid-pixel count instead.
    return jnp.sum(out[:, 0, 0]) / float(n * hw)


# --------------------------------------------------------------------------- #
# L1: lane-dense flat view, row-tiled, no padding copy                         #
# --------------------------------------------------------------------------- #
def _l1_kernel(pred_ref, tgt_ref, out_ref, acc_ref, *, rows):
    i = pl.program_id(0)
    tr = pred_ref.shape[0]

    @pl.when(i == 0)
    def _():
        acc_ref[...] = jnp.zeros_like(acc_ref)

    row = jax.lax.broadcasted_iota(jnp.int32, pred_ref.shape, 0) + i * tr
    diff = jnp.abs(pred_ref[...].astype(jnp.float32)
                   - tgt_ref[...].astype(jnp.float32))
    # Ragged last row-block: rows past `rows` are clipped/garbage -> zero them.
    acc_ref[...] += jnp.where(row < rows, diff, 0.0)

    @pl.when(i == pl.num_programs(0) - 1)
    def _():
        out_ref[...] = jnp.zeros_like(out_ref) + jnp.sum(acc_ref[...])


def l1_loss(pred, tgt, *, tile_rows=None):
    total = pred.size
    if total < _MIN_PALLAS_ELEMS or total % 128 != 0:
        # TODO(synk): tiny or non-128-divisible inputs go through plain jnp
        # (avoids a pallas launch / a padding copy for a memory-bound op).
        return jnp.mean(jnp.abs(pred.astype(jnp.float32)
                                - tgt.astype(jnp.float32)))

    lane = 512 if total % 512 == 0 else (256 if total % 256 == 0 else 128)
    rows = total // lane
    pred2d = pred.reshape(rows, lane)          # free contiguous reshapes
    tgt2d = tgt.reshape(rows, lane)

    itemsize = jnp.dtype(pred.dtype).itemsize
    if tile_rows is None:
        # Per-step VMEM: 2 inputs * 2 buffers * TR*LANE*itemsize + TR*LANE*4 (acc).
        tile_rows = _VMEM_BUDGET // (lane * (4 * itemsize + 4))
    tile_rows = max(8, (tile_rows // 8) * 8)
    tr = rows if rows <= tile_rows else tile_rows
    grid = (pl.cdiv(rows, tr),)

    kernel = functools.partial(_l1_kernel, rows=rows)
    out = pl.pallas_call(
        kernel,
        out_shape=jax.ShapeDtypeStruct((8, 128), jnp.float32),
        grid=grid,
        in_specs=[
            pl.BlockSpec((tr, lane), lambda i: (i, 0)),
            pl.BlockSpec((tr, lane), lambda i: (i, 0)),
        ],
        out_specs=pl.BlockSpec((8, 128), lambda i: (0, 0)),
        scratch_shapes=[pltpu.VMEM((tr, lane), jnp.float32)],
        compiler_params=pltpu.CompilerParams(
            dimension_semantics=("arbitrary",)),
        cost_estimate=pl.CostEstimate(
            flops=int(2 * total), transcendentals=0,
            bytes_accessed=int(2 * total * itemsize + 8 * 128 * 4)),
    )(pred2d, tgt2d)
    return out[0, 0] / float(total)


# --------------------------------------------------------------------------- #
# Balancing: tiny elementwise op -> plain jnp (XLA fuses it; no kernel launch) #
# --------------------------------------------------------------------------- #
def balance_losses(losses_vec, gates_vec, weights_vec):
    weighted = losses_vec * gates_vec * weights_vec
    return weighted, jnp.sum(weighted)


# --------------------------------------------------------------------------- #
# MTLLoss (JAX/Pallas)                                                        #
# --------------------------------------------------------------------------- #
class MTLLossPallas:
    """Mirrors MTLLoss.forward semantics with Pallas-backed per-task losses."""

    def __init__(self, cfg, tasks_dict, n_epochs=1, batch_size=1):
        self.batch_size = batch_size
        self.cfg = cfg
        self.tasks = [t for t, status in tasks_dict.items() if status]

        # TODO(synk): the original `task_to_loss_fn` registry / cfg plumbing is
        # external Python dispatch with no kernel equivalent; a representative
        # two-task registry is instantiated here.
        _loss_registry = {
            'segment': cross_entropy_loss,
            'depth': l1_loss,
        }
        self.task_to_fn = {
            t: _loss_registry[t] for t in self.tasks if t in _loss_registry
        }
        self.loss_to_weights = {
            'losses/' + k: v for k, v in dict(cfg['LOSS_INIT_WEIGHTS']).items()
        }
        self.loss_to_start = {
            'losses/' + k: v for k, v in dict(cfg['LOSS_START_EPOCH']).items()
        }

    def forward(self, predictions, targets, epoch=1):
        # forward_mtsl: per-task losses
        loss_dict = {}
        losses_to_add = {}
        for task, fn in self.task_to_fn.items():
            # NOTE: `targets.get(task, targets)` mirrors the original module's
            # (latent) fallback-to-whole-dict behavior.
            task_loss = fn(predictions[task], targets.get(task, targets))
            losses_to_add[f'losses/{task}_loss'] = task_loss

        # epoch_start gating + handcrafted_balancing + sum (plain jnp; fused)
        names = list(losses_to_add.keys())
        losses_vec = jnp.stack([losses_to_add[nm] for nm in names])
        gates_vec = jnp.array(
            [1.0 if epoch >= self.loss_to_start.get(nm, 0) else 0.0 for nm in names],
            dtype=jnp.float32)
        weights_vec = jnp.array(
            [float(self.loss_to_weights.get(nm, 1.0)) for nm in names],
            dtype=jnp.float32)
        weighted, total = balance_losses(losses_vec, gates_vec, weights_vec)

        for idx, nm in enumerate(names):
            losses_to_add[nm] = weighted[idx]
        loss_dict.update(losses_to_add)
        return total, loss_dict


# --------------------------------------------------------------------------- #
# References + main                                                           #
# --------------------------------------------------------------------------- #
def _ce_ref(logits, labels):
    n, c, h, w = logits.shape
    lg = jnp.transpose(logits, (0, 2, 3, 1)).reshape(-1, c).astype(jnp.float32)
    lb = labels.reshape(-1).astype(jnp.int32)
    m = jnp.max(lg, axis=-1, keepdims=True)
    lse = jnp.log(jnp.sum(jnp.exp(lg - m), axis=-1)) + m[:, 0]
    tgt = jnp.take_along_axis(lg, lb[:, None], axis=-1)[:, 0]
    return jnp.mean(lse - tgt)


def _l1_ref(a, b):
    return jnp.mean(jnp.abs(a.astype(jnp.float32) - b.astype(jnp.float32)))


if __name__ == "__main__":
    cfg = {
        'LOSS_INIT_WEIGHTS': {'segment_loss': 1.0, 'depth_loss': 10.0},
        'LOSS_START_EPOCH': {'segment_loss': 0, 'depth_loss': 0},
    }
    tasks_dict = {'segment': True, 'depth': True}
    mtl = MTLLossPallas(cfg, tasks_dict, n_epochs=1, batch_size=2)

    key = jax.random.PRNGKey(0)
    k1, k2, k3, k4, k5, k6, k7, k8 = jax.random.split(key, 8)

    # --- Primary MTL forward: batch=2, classes=4, spatial=32 (Pallas path) ---
    seg_logits = jax.random.normal(k1, (2, 4, 32, 32), dtype=jnp.float32)
    seg_labels = jax.random.randint(k2, (2, 32, 32), 0, 4, dtype=jnp.int32)
    depth_pred = jax.random.normal(k3, (2, 1, 32, 32), dtype=jnp.float32)
    depth_tgt = jax.random.normal(k4, (2, 1, 32, 32), dtype=jnp.float32)

    predictions = {'segment': seg_logits, 'depth': depth_pred}
    targets = {'segment': seg_labels, 'depth': depth_tgt}

    total_loss, loss_dict = mtl.forward(predictions, targets, epoch=1)
    total_loss = jax.block_until_ready(total_loss)
    loss_dict = jax.tree_util.tree_map(jax.block_until_ready, loss_dict)

    ref_total = (1.0 * _ce_ref(seg_logits, seg_labels)
                 + 10.0 * _l1_ref(depth_pred, depth_tgt))
    assert jnp.allclose(total_loss, ref_total, rtol=1e-5, atol=1e-5), (
        total_loss, ref_total)

    # --- Stress: multi-tile grids + ragged-tail masking + parallel batch axis ---
    big_logits = jax.random.normal(k5, (2, 5, 80, 100), dtype=jnp.float32)  # hw=8000
    big_labels = jax.random.randint(k6, (2, 80, 100), 0, 5, dtype=jnp.int32)
    ce_tiled = cross_entropy_loss(big_logits, big_labels, max_tp=1024)      # 8 pixel tiles, ragged last
    ce_tiled = jax.block_until_ready(ce_tiled)
    assert jnp.allclose(ce_tiled, _ce_ref(big_logits, big_labels),
                        rtol=1e-4, atol=1e-5), ce_tiled

    big_pred = jax.random.normal(k7, (2, 3, 80, 100), dtype=jnp.float32)    # 48000 elems -> lane=128
    big_tgt = jax.random.normal(k8, (2, 3, 80, 100), dtype=jnp.float32)
    l1_tiled = l1_loss(big_pred, big_tgt, tile_rows=64)                     # 6 row tiles, ragged last
    l1_tiled = jax.block_until_ready(l1_tiled)
    assert jnp.allclose(l1_tiled, _l1_ref(big_pred, big_tgt),
                        rtol=1e-4, atol=1e-5), l1_tiled

    # --- Tiny-head fallback path (plain jnp, no kernel launch) ---
    tiny_logits = jax.random.normal(k1, (2, 4, 8, 8), dtype=jnp.float32)
    tiny_labels = jax.random.randint(k2, (2, 8, 8), 0, 4, dtype=jnp.int32)
    tiny_ce = jax.block_until_ready(cross_entropy_loss(tiny_logits, tiny_labels))
    assert jnp.allclose(tiny_ce, _ce_ref(tiny_logits, tiny_labels),
                        rtol=1e-5, atol=1e-5), tiny_ce

    print("KERNEL_OK")
</pallas_src>

<mosaic_0001>
module attributes {stable_mosaic.version = 11 : i64} {
  func.func @_ce_kernel(%arg0: i32, %arg1: i32, %arg2: memref<1x4x1024xf32, #tpu.memory_space<vmem>>, %arg3: memref<1x1x1024xi32, #tpu.memory_space<vmem>>, %arg4: memref<1x8x128xf32, #tpu.memory_space<vmem>>, %arg5: memref<1x1024xf32, #tpu.memory_space<vmem>>) attributes {dimension_semantics = [#tpu.dimension_semantics<parallel>, #tpu.dimension_semantics<arbitrary>], iteration_bounds = array<i64: 2, 1>, scalar_prefetch = 0 : i64, scratch_operands = 1 : i64, tpu.core_type = #tpu.core_type<tc>, window_params = [{transform_indices = @transform_0, window_bounds = array<i64: 1, 4, 1024>}, {transform_indices = @transform_1, window_bounds = array<i64: 1, 1, 1024>}, {transform_indices = @transform_2, window_bounds = array<i64: 1, 8, 128>}]} {
    %c0_i32 = arith.constant 0 : i32
    %0 = arith.cmpi eq, %arg1, %c0_i32 : i32
    %1 = arith.extui %0 : i1 to i32
    %c0_i32_0 = arith.constant 0 : i32
    %2 = arith.cmpi ne, %1, %c0_i32_0 : i32
    scf.if %2 {
      %cst_19 = arith.constant 0.000000e+00 : f32
      %47 = vector.broadcast %cst_19 : f32 to vector<1x1024xf32>
      %c0_20 = arith.constant 0 : index
      %c0_21 = arith.constant 0 : index
      %48 = vector.load %arg5[%c0_20, %c0_21] : memref<1x1024xf32, #tpu.memory_space<vmem>>, vector<1x1024xf32>
      tpu.vector_store %arg5[%c0_20, %c0_21], %47 {strides = array<i32>} : memref<1x1024xf32, #tpu.memory_space<vmem>>, vector<1x1024xf32>,
    } else {
    }
    %c0 = arith.constant 0 : index
    %c0_1 = arith.constant 0 : index
    %c0_2 = arith.constant 0 : index
    %3 = vector.load %arg2[%c0, %c0_1, %c0_2] : memref<1x4x1024xf32, #tpu.memory_space<vmem>>, vector<1x4x1024xf32>
    %4 = vector.shape_cast %3 : vector<1x4x1024xf32> to vector<4x1024xf32>
    %c0_3 = arith.constant 0 : index
    %c0_4 = arith.constant 0 : index
    %c0_5 = arith.constant 0 : index
    %5 = vector.load %arg3[%c0_3, %c0_4, %c0_5] : memref<1x1x1024xi32, #tpu.memory_space<vmem>>, vector<1x1x1024xi32>
    %6 = vector.shape_cast %5 : vector<1x1x1024xi32> to vector<1x1024xi32>
    %7 = tpu.iota {dimensions = array<i32: 1>} : vector<1x1024xi32>
    %c1024_i32 = arith.constant 1024 : i32
    %8 = arith.muli %arg1, %c1024_i32 : i32
    %9 = vector.broadcast %8 : i32 to vector<1x1024xi32>
    %10 = arith.addi %7, %9 : vector<1x1024xi32>
    %c1024_i32_6 = arith.constant 1024 : i32
    %11 = vector.broadcast %c1024_i32_6 : i32 to vector<1x1024xi32>
    %12 = arith.cmpi slt, %10, %11 : vector<1x1024xi32>
    %cst = arith.constant 0.000000e+00 : f32
    %13 = vector.shape_cast %12 : vector<1x1024xi1> to vector<1x1024xi1>
    %14 = vector.broadcast %13 : vector<1x1024xi1> to vector<4x1024xi1>
    %15 = vector.broadcast %cst : f32 to vector<4x1024xf32>
    %16 = arith.select %14, %4, %15 : vector<4x1024xi1>, vector<4x1024xf32>
    %cst_7 = arith.constant dense<0xFF800000> : vector<1024xf32>
    %17 = vector.multi_reduction <maximumf>, %16, %cst_7 [0] : vector<4x1024xf32> to vector<1024xf32>
    %18 = vector.shape_cast %17 : vector<1024xf32> to vector<1x1024xf32>
    %19 = vector.broadcast %18 : vector<1x1024xf32> to vector<4x1024xf32>
    %20 = arith.subf %16, %19 : vector<4x1024xf32>
    %21 = math.exp %20 : vector<4x1024xf32>
    %cst_8 = arith.constant dense<0.000000e+00> : vector<1024xf32>
    %22 = vector.multi_reduction <add>, %21, %cst_8 [0] : vector<4x1024xf32> to vector<1024xf32>
    %23 = vector.shape_cast %22 : vector<1024xf32> to vector<1x1024xf32>
    %24 = math.log %23 : vector<1x1024xf32>
    %25 = tpu.iota {dimensions = array<i32: 0>} : vector<4x1024xi32>
    %26 = vector.broadcast %6 : vector<1x1024xi32> to vector<4x1024xi32>
    %27 = arith.cmpi eq, %25, %26 : vector<4x1024xi32>
    %cst_9 = arith.constant 0.000000e+00 : f32
    %28 = vector.broadcast %cst_9 : f32 to vector<4x1024xf32>
    %29 = arith.select %27, %20, %28 : vector<4x1024xi1>, vector<4x1024xf32>
    %cst_10 = arith.constant dense<0.000000e+00> : vector<1024xf32>
    %30 = vector.multi_reduction <add>, %29, %cst_10 [0] : vector<4x1024xf32> to vector<1024xf32>
    %31 = vector.shape_cast %30 : vector<1024xf32> to vector<1x1024xf32>
    %c0_i32_11 = arith.constant 0 : i32
    %32 = vector.broadcast %c0_i32_11 : i32 to vector<1x1024xi32>
    %33 = arith.cmpi sge, %6, %32 : vector<1x1024xi32>
    %c4_i32 = arith.constant 4 : i32
    %34 = vector.broadcast %c4_i32 : i32 to vector<1x1024xi32>
    %35 = arith.cmpi slt, %6, %34 : vector<1x1024xi32>
    %36 = arith.andi %33, %35 : vector<1x1024xi1>
    %37 = arith.andi %12, %36 : vector<1x1024xi1>
    %c0_12 = arith.constant 0 : index
    %c0_13 = arith.constant 0 : index
    %38 = vector.load %arg5[%c0_12, %c0_13] : memref<1x1024xf32, #tpu.memory_space<vmem>>, vector<1x1024xf32>
    %39 = arith.subf %24, %31 : vector<1x1024xf32>
    %cst_14 = arith.constant 0.000000e+00 : f32
    %40 = vector.broadcast %cst_14 : f32 to vector<1x1024xf32>
    %41 = arith.select %37, %39, %40 : vector<1x1024xi1>, vector<1x1024xf32>
    %42 = arith.addf %38, %41 : vector<1x1024xf32>
    %c0_15 = arith.constant 0 : index
    %c0_16 = arith.constant 0 : index
    %43 = vector.load %arg5[%c0_15, %c0_16] : memref<1x1024xf32, #tpu.memory_space<vmem>>, vector<1x1024xf32>
    tpu.vector_store %arg5[%c0_15, %c0_16], %42 {strides = array<i32>} : memref<1x1024xf32, #tpu.memory_space<vmem>>, vector<1x1024xf32>,
    %c0_i32_17 = arith.constant 0 : i32
    %44 = arith.cmpi eq, %arg1, %c0_i32_17 : i32
    %45 = arith.extui %44 : i1 to i32
    %c0_i32_18 = arith.constant 0 : i32
    %46 = arith.cmpi ne, %45, %c0_i32_18 : i32
    scf.if %46 {
      %cst_19 = arith.constant 0.000000e+00 : f32
      %47 = vector.broadcast %cst_19 : f32 to vector<1x8x128xf32>
      %c0_20 = arith.constant 0 : index
      %c0_21 = arith.constant 0 : index
      %48 = vector.load %arg5[%c0_20, %c0_21] : memref<1x1024xf32, #tpu.memory_space<vmem>>, vector<1x1024xf32>
      %49 = vector.shape_cast %48 : vector<1x1024xf32> to vector<1x1x1024xf32>
      %cst_22 = arith.constant dense<0.000000e+00> : vector<1xf32>
      %50 = vector.multi_reduction <add>, %49, %cst_22 [1, 2] : vector<1x1x1024xf32> to vector<1xf32>
      %51 = vector.shape_cast %50 : vector<1xf32> to vector<1x1x1xf32>
      %52 = vector.extract %51[0, 0, 0] : f32 from vector<1x1x1xf32>
      %53 = vector.broadcast %52 : f32 to vector<1x8x128xf32>
      %54 = arith.addf %47, %53 : vector<1x8x128xf32>
      %c0_23 = arith.constant 0 : index
      %c0_24 = arith.constant 0 : index
      %c0_25 = arith.constant 0 : index
      %55 = vector.load %arg4[%c0_23, %c0_24, %c0_25] : memref<1x8x128xf32, #tpu.memory_space<vmem>>, vector<1x8x128xf32>
      tpu.vector_store %arg4[%c0_23, %c0_24, %c0_25], %54 {strides = array<i32>} : memref<1x8x128xf32, #tpu.memory_space<vmem>>, vector<1x8x128xf32>,
    } else {
    }
    return
  }
  func.func @transform_0(%arg0: i32, %arg1: i32) -> (i32, i32, i32) {
    %c0_i32 = arith.constant 0 : i32
    %c0_i32_0 = arith.constant 0 : i32
    return %arg0, %c0_i32, %arg1 : i32, i32, i32
  }
  func.func @transform_1(%arg0: i32, %arg1: i32) -> (i32, i32, i32) {
    %c0_i32 = arith.constant 0 : i32
    %c0_i32_0 = arith.constant 0 : i32
    return %arg0, %c0_i32, %arg1 : i32, i32, i32
  }
  func.func @transform_2(%arg0: i32, %arg1: i32) -> (i32, i32, i32) {
    %c0_i32 = arith.constant 0 : i32
    %c0_i32_0 = arith.constant 0 : i32
    %c0_i32_1 = arith.constant 0 : i32
    return %arg0, %c0_i32, %c0_i32_0 : i32, i32, i32
  }
}

</mosaic_0001>

<llo_original>
// kernel: tpu_custom_call.1
$region0: #{tpu_custom_call.1}
  #allocation0 [shape = 'u32[]', space=smem, size = 0x4, offset = 0x4, fixed_abs, tag = 'smem constant byte address 0x4 - core index']
  #allocation1 [shape = 'u32[144,128]{1,0:T(1,128)}', space=vmem, size = 0x12000, scoped, tag = 'internal scratch']
  #allocation2 [shape = 'f32[1,1024]{1,0:T(1,128)}', space=vmem, size = 0x1000, scoped, tag = 'scratch operand']
  %s0 = inlined_call_operand.hbm [shape: f32[2,4,1024], index: 0, kind: input, shape index: {}]
  %s1 = inlined_call_operand.hbm [shape: s32[2,1,1024], index: 1, kind: input, shape index: {}]
  %s2 = inlined_call_operand.hbm [shape: f32[2,8,128], index: 2, kind: output, shape index: {}]
  %s3 = sld [smem:[#allocation0]]
  $region57: #{tpu_custom_call.1} parent=0
    _
  %s5 = ssub.s32 1, %s3
  %s6 = scalar_select 0, %s5, %s3
  $region1: #{tpu_custom_call.1} parent=0
    #allocation3 [shape = 'u8[32768]{0}', space=vmem, size = 0x8000, scoped, tag = 'input window, operand 0']
    #allocation4 [shape = 's32[2]{0}', space=sflag, size = 0x8, scoped, tag = 'scoped memory for tpu_custom_call.1']
    #allocation5 [shape = 's32[2]{0}', space=sflag, size = 0x8, scoped, tag = 'scoped memory for tpu_custom_call.1']
    #allocation6 [shape = 'u8[8192]{0}', space=vmem, size = 0x2000, scoped, tag = 'input window, operand 1']
    #allocation7 [shape = 's32[2]{0}', space=sflag, size = 0x8, scoped, tag = 'scoped memory for tpu_custom_call.1']
    #allocation8 [shape = 'u8[8192]{0}', space=vmem, size = 0x2000, scoped, tag = 'output window, operand 0']
    %7 = vsyncpa [#allocation4], 0
    %s8 = scalar_lea.sflag [#allocation4], 1
    %9 = vsyncpa %s8, 0
    %10 = vsyncpa [#allocation7], 0
    %s11 = scalar_lea.sflag [#allocation7], 1
    %12 = vsyncpa %s11, 0
    %13 = vsyncpa [#allocation5], 0
    %s14 = scalar_lea.sflag [#allocation5], 1
    %15 = vsyncpa %s14, 0
    loop: start=0, step=1, limit=4
    $region2: #{tpu_custom_call.1} parent=1 // loop_pre_header
      _
    $region3: #{tpu_custom_call.1} parent=1 // loop_header
      %s17 = sphi 0, %s21
      %p18 = scmp.ge.s32.totalorder %s17, 4
      %s24 = sphi 0, %s36
      %s25 = sphi 0, %s32
      %s26 = sphi 0, %s24
      %s27 = sphi 0, %s25
      %s28 = sphi 0, %s26
      %s29 = sphi 0, %s27
      %s41 = sphi 0, %s43
      %s44 = sphi 0, %s41
      %s45 = sphi 0, %s44
      %s61 = sphi 0, %s45
      %s69 = sphi 0, %s71
      %s72 = sphi 0, %s69
      %s73 = sphi 0, %s72
      %s89 = sphi 0, %s73
      %s95 = sphi 0, %s97
      %s98 = sphi 0, %s95
      %s99 = sphi 0, %s98
      %s115 = sphi 0, %s99
    $region4: #{tpu_custom_call.1} parent=1 // loop_header_branch
      %20 = sbr.rel (%p18) target = $region8
    $region5: #{tpu_custom_call.1} parent=1 // loop_body
      %s22 = ssub.s32 %s17, 1
      %s23 = ssub.s32 %s17, 2
      %s30 = sadd.s32 1, %s25
      %p31 = scmp.ge.s32.totalorder %s30, 1
      %s32 = scalar_select %p31, 0, %s30
      %s33 = sadd.s32 1, %s24
      %s34 = scalar_select %p31, %s33, %s24
      %p35 = scmp.ge.s32.totalorder %s34, 2
      %s36 = scalar_select %p35, 0, %s34
      %s37 = ssub.s32 %s24, %s36
      %s38 = ssub.s32 %s25, %s32
      %s39 = sor.u32 %s37, %s38
      %p40 = scmp.eq.s32.totalorder %s39, 0
      %s42 = sadd.s32 %s41, 1
      %s43 = scalar_select %p40, %s41, %s42
      %p46 = pneg %p40
      %p47 = scmp.eq.s32.totalorder %s17, 1
      %p48 = por %p46, %p47
      %p49 = scmp.ne.s32.totalorder %s41, %s44
      %p50 = scmp.eq.s32.totalorder %s17, 0
      %p51 = por %p49, %p50
      %p52 = scmp.ne.s32.totalorder %s41, %s44
      %p53 = scmp.eq.s32.totalorder %s22, 1
      %p54 = por %p52, %p53
      %p55 = scmp.ne.s32.totalorder %s44, %s45
      %p56 = scmp.eq.s32.totalorder %s22, 0
      %p57 = por %p55, %p56
      %p58 = scmp.ne.s32.totalorder %s44, %s45
      %p59 = scmp.eq.s32.totalorder %s23, 1
      %p60 = por %p58, %p59
      %p62 = scmp.ne.s32.totalorder %s45, %s61
      %p63 = scmp.eq.s32.totalorder %s23, 0
      %p64 = por %p62, %p63
      %s65 = ssub.s32 %s24, %s36
      %s66 = ssub.s32 %s25, %s32
      %s67 = sor.u32 %s65, %s66
      %p68 = scmp.eq.s32.totalorder %s67, 0
      %s70 = sadd.s32 %s69, 1
      %s71 = scalar_select %p68, %s69, %s70
      %p74 = pneg %p68
      %p75 = scmp.eq.s32.totalorder %s17, 1
      %p76 = por %p74, %p75
      %p77 = scmp.ne.s32.totalorder %s69, %s72
      %p78 = scmp.eq.s32.totalorder %s17, 0
      %p79 = por %p77, %p78
      %p80 = scmp.ne.s32.totalorder %s69, %s72
      %p81 = scmp.eq.s32.totalorder %s22, 1
      %p82 = por %p80, %p81
      %p83 = scmp.ne.s32.totalorder %s72, %s73
      %p84 = scmp.eq.s32.totalorder %s22, 0
      %p85 = por %p83, %p84
      %p86 = scmp.ne.s32.totalorder %s72, %s73
      %p87 = scmp.eq.s32.totalorder %s23, 1
      %p88 = por %p86, %p87
      %p90 = scmp.ne.s32.totalorder %s73, %s89
      %p91 = scmp.eq.s32.totalorder %s23, 0
      %p92 = por %p90, %p91
      %s93 = ssub.s32 %s24, %s36
      %p94 = scmp.eq.s32.totalorder %s93, 0
      %s96 = sadd.s32 %s95, 1
      %s97 = scalar_select %p94, %s95, %s96
      %p100 = pneg %p94
      %p101 = scmp.eq.s32.totalorder %s17, 1
      %p102 = por %p100, %p101
      %p103 = scmp.ne.s32.totalorder %s95, %s98
      %p104 = scmp.eq.s32.totalorder %s17, 0
      %p105 = por %p103, %p104
      %p106 = scmp.ne.s32.totalorder %s95, %s98
      %p107 = scmp.eq.s32.totalorder %s22, 1
      %p108 = por %p106, %p107
      %p109 = scmp.ne.s32.totalorder %s98, %s99
      %p110 = scmp.eq.s32.totalorder %s22, 0
      %p111 = por %p109, %p110
      %p112 = scmp.ne.s32.totalorder %s98, %s99
      %p113 = scmp.eq.s32.totalorder %s23, 1
      %p114 = por %p112, %p113
      %p116 = scmp.ne.s32.totalorder %s99, %s115
      %p117 = scmp.eq.s32.totalorder %s23, 0
      %p118 = por %p116, %p117
      %p119 = scmp.le.s32.totalorder 1, %s17
      %p120 = scmp.lt.s32.totalorder %s17, 3
      %p121 = pnand %p119, %p120
      %p122 = pneg %p121
      // Predicated region
      $region9: #{tpu_custom_call.1} parent=5 // pred_check
        _
      $region10: #{tpu_custom_call.1} parent=5 // pred_check_branch
        %124 = sbr.rel (%p121) target = $region12
      $region11: #{tpu_custom_call.1} parent=5 // pred_region
        %s125 = ssub.s32 %s17, 1
      $region12: #{tpu_custom_call.1} parent=5 // pred_fallthru
        _
      %p126 = scmp.lt.s32.totalorder %s17, 2
      // Predicated region
      $region13: #{tpu_custom_call.1} parent=5 // pred_check
        %p127 = pneg %p126
      $region14: #{tpu_custom_call.1} parent=5 // pred_check_branch
        %129 = sbr.rel (%p127) target = $region16
      $region15: #{tpu_custom_call.1} parent=5 // pred_region
        // Predicated region
        $region17: #{tpu_custom_call.1} parent=15 // pred_check
          %p130 = pneg %p51
        $region18: #{tpu_custom_call.1} parent=15 // pred_check_branch
          %132 = sbr.rel (%p130) target = $region20
        $region19: #{tpu_custom_call.1} parent=15 // pred_region
          %s133 = sand.u32 %s41, 1
          %s134 = scalar_lea.sflag [#allocation4], %s133
          %s135 = sand.u32 %s41, 1
          %s136 = smul.addr %s135, 32
          %s137 = scalar_lea.vmem [#allocation3], %s136
          %s138 = smul.u32 8, %s25
          %s140 = ssub.s32 512, 512
          %141 = vsyncadd %s134, %s140
          %s142 = smul.addr %s24, 8
          %s143 = sadd.s32 %s138, %s142
          %s144 = smul.addr %s143, 64
          %s145 = scalar_lea.hbm %s0, %s144
          %s147 = sshll.u32 %s137, 4
          %s148 = int_to_ptr.vmem [resolvable:$true] %s147
          %150 = dma.hbm_to_vmem [thread:$0]  %s145, 512, %s148, %s134
        $region20: #{tpu_custom_call.1} parent=15 // pred_fallthru
          _
        // Predicated region
        $region21: #{tpu_custom_call.1} parent=15 // pred_check
          %p151 = pneg %p79
        $region22: #{tpu_custom_call.1} parent=15 // pred_check_branch
          %153 = sbr.rel (%p151) target = $region24
        $region23: #{tpu_custom_call.1} parent=15 // pred_region
          %s154 = sand.u32 %s69, 1
          %s155 = scalar_lea.sflag [#allocation7], %s154
          %s156 = sand.u32 %s69, 1
          %s157 = smul.addr %s156, 8
          %s158 = scalar_lea.vmem [#allocation6], %s157
          %s159 = smul.u32 8, %s25
          %s161 = ssub.s32 128, 128
          %162 = vsyncadd %s155, %s161
          %s163 = smul.addr %s24, 8
          %s164 = sadd.s32 %s159, %s163
          %s165 = smul.addr %s164, 16
          %s166 = scalar_lea.hbm %s1, %s165
          %s168 = sshll.u32 %s158, 4
          %s169 = int_to_ptr.vmem [resolvable:$true] %s168
          %171 = dma.hbm_to_vmem [thread:$0]  %s166, 128, %s169, %s155
        $region24: #{tpu_custom_call.1} parent=15 // pred_fallthru
          _
      $region16: #{tpu_custom_call.1} parent=5 // pred_fallthru
        _
      %p172 = scmp.le.s32.totalorder 1, %s17
      %p173 = scmp.lt.s32.totalorder %s17, 3
      %p174 = pnand %p172, %p173
      %p175 = pneg %p174
      // Predicated region
      $region25: #{tpu_custom_call.1} parent=5 // pred_check
        _
      $region26: #{tpu_custom_call.1} parent=5 // pred_check_branch
        %177 = sbr.rel (%p174) target = $region28
      $region27: #{tpu_custom_call.1} parent=5 // pred_region
        %s178 = ssub.s32 %s17, 1
        %s179 = sand.u32 %s44, 1
        %s180 = scalar_lea.sflag [#allocation4], %s179
        %s181 = sand.u32 %s44, 1
        %s182 = smul.addr %s181, 32
        %s183 = scalar_lea.vmem [#allocation3], %s182
        // Predicated region
        $region29: #{tpu_custom_call.1} parent=27 // pred_check
          %p184 = pneg %p57
        $region30: #{tpu_custom_call.1} parent=27 // pred_check_branch
          %186 = sbr.rel (%p184) target = $region32
        $region31: #{tpu_custom_call.1} parent=27 // pred_region
          %187 = dma.done %s180, 512
        $region32: #{tpu_custom_call.1} parent=27 // pred_fallthru
          _
        %s188 = sand.u32 %s72, 1
        %s189 = scalar_lea.sflag [#allocation7], %s188
        %s190 = sand.u32 %s72, 1
        %s191 = smul.addr %s190, 8
        %s192 = scalar_lea.vmem [#allocation6], %s191
        // Predicated region
        $region33: #{tpu_custom_call.1} parent=27 // pred_check
          %p193 = pneg %p85
        $region34: #{tpu_custom_call.1} parent=27 // pred_check_branch
          %195 = sbr.rel (%p193) target = $region36
        $region35: #{tpu_custom_call.1} parent=27 // pred_region
          %196 = dma.done %s189, 128
        $region36: #{tpu_custom_call.1} parent=27 // pred_fallthru
          _
        %s197 = sand.u32 %s44, 1
        %s198 = scalar_lea.sflag [#allocation4], %s197
        %s199 = sand.u32 %s44, 1
        %s200 = smul.addr %s199, 32
        %s201 = scalar_lea.vmem [#allocation3], %s200
        %p202 = pneg %p57
        %p203 = pneg %p54
        %s204 = sand.u32 %s72, 1
        %s205 = scalar_lea.sflag [#allocation7], %s204
        %s206 = sand.u32 %s72, 1
        %s207 = smul.addr %s206, 8
        %s208 = scalar_lea.vmem [#allocation6], %s207
        %p209 = pneg %p85
        %p210 = pneg %p82
        %p211 = pneg %p111
        %p212 = pneg %p108
        %s213 = sand.u32 %s98, 1
        %s214 = scalar_lea.sflag [#allocation5], %s213
        %s215 = sand.u32 %s98, 1
        %s216 = smul.addr %s215, 8
        %s217 = scalar_lea.vmem [#allocation8], %s216
        %s218 = smul.u32 8, %s27
        %s219 = smul.u32 8, %s27
        %p220 = scmp.eq.s32.totalorder %s27, 0
        // Predicated region
        $region37: #{tpu_custom_call.1} parent=27 // pred_check
          %p221 = pneg %p220
        $region38: #{tpu_custom_call.1} parent=27 // pred_check_branch
          %223 = sbr.rel (%p221) target = $region40
        $region39: #{tpu_custom_call.1} parent=27 // pred_region
          %224 = vst [vmem:[#allocation2] sm:$0xff] 0.0
        $region40: #{tpu_custom_call.1} parent=27 // pred_fallthru
          _
        %v225 = vld [vmem:[%s183] sm:$0xff]
        %v226 = vld [vmem:[%s183 + $0x8] sm:$0xff]
        %v227 = vld [vmem:[%s183 + $0x10] sm:$0xff]
        %v228 = vld [vmem:[%s183 + $0x18] sm:$0xff]
        %v229 = vld [vmem:[%s192] sm:$0xff]
        %v230 = vlaneseq
        %v231 = vand.u32 %v230, 127
        %v232 = vadd.s32 %v231, 128
        %v233 = vadd.s32 %v231, 256
        %v234 = vadd.s32 %v231, 384
        %v235 = vadd.s32 %v231, 512
        %v236 = vadd.s32 %v231, 640
        %v237 = vadd.s32 %v231, 768
        %v238 = vadd.s32 %v231, 896
        %s239 = smul.u32 %s27, 1024
        %v240 = vstv %s239
        %v241 = vadd.s32 %v231, %v240
        %v242 = vadd.s32 %v232, %v240
        %v243 = vadd.s32 %v233, %v240
        %v244 = vadd.s32 %v234, %v240
        %v245 = vadd.s32 %v235, %v240
        %v246 = vadd.s32 %v236, %v240
        %v247 = vadd.s32 %v237, %v240
        %v248 = vadd.s32 %v238, %v240
        %vm249 = vcmp.lt.s32.totalorder %v241, 1024
        %vm250 = vcmp.lt.s32.totalorder %v242, 1024
        %vm251 = vcmp.lt.s32.totalorder %v243, 1024
        %vm252 = vcmp.lt.s32.totalorder %v244, 1024
        %vm253 = vcmp.lt.s32.totalorder %v245, 1024
        %vm254 = vcmp.lt.s32.totalorder %v246, 1024
        %vm255 = vcmp.lt.s32.totalorder %v247, 1024
        %vm256 = vcmp.lt.s32.totalorder %v248, 1024
        %v257 = vsel %vm249, 1, 0
        %v258 = vsel %vm250, 1, 0
        %v259 = vsel %vm251, 1, 0
        %v260 = vsel %vm252, 1, 0
        %v261 = vsel %vm253, 1, 0
        %v262 = vsel %vm254, 1, 0
        %v263 = vsel %vm255, 1, 0
        %v264 = vsel %vm256, 1, 0
        %vm265 = vcmp.eq.s32.totalorder %v257, 1
        %vm266 = vcmp.eq.s32.totalorder %v258, 1
        %vm267 = vcmp.eq.s32.totalorder %v259, 1
        %vm268 = vcmp.eq.s32.totalorder %v260, 1
        %vm269 = vcmp.eq.s32.totalorder %v261, 1
        %vm270 = vcmp.eq.s32.totalorder %v262, 1
        %vm271 = vcmp.eq.s32.totalorder %v263, 1
        %vm272 = vcmp.eq.s32.totalorder %v264, 1
        %v277 = vcombine.high %v225, %v225
        %v278 = vcombine.high %v226, %v226
        %v279 = vcombine.high %v227, %v227
        %v280 = vcombine.high %v228, %v228
        %v285 = vsel %vm265, %v225, 0.0
        %v286 = vsel %vm266, %v277, 0.0
        %v287 = vsel %vm267, %v226, 0.0
        %v288 = vsel %vm268, %v278, 0.0
        %v289 = vsel %vm269, %v227, 0.0
        %v290 = vsel %vm270, %v279, 0.0
        %v291 = vsel %vm271, %v228, 0.0
        %v292 = vsel %vm272, %v280, 0.0
        %vm293 = vcmask 1043456
        %v294 = vsel %vm293, %v285, -inf
        %v295 = vrot.slane %v294, 4
        %v296 = vmax.f32 %v294, %v295
        %v297 = vrot.slane %v296, 2
        %v298 = vmax.f32 %v296, %v297
        %v299 = vrot.slane %v298, 1
        %v300 = vmax.f32 %v298, %v299
        %v301 = vsel %vm293, %v286, -inf
        %v302 = vrot.slane %v301, 4
        %v303 = vmax.f32 %v301, %v302
        %v304 = vrot.slane %v303, 2
        %v305 = vmax.f32 %v303, %v304
        %v306 = vrot.slane %v305, 1
        %v307 = vmax.f32 %v305, %v306
        %v308 = vsel %vm293, %v287, -inf
        %v309 = vrot.slane %v308, 4
        %v310 = vmax.f32 %v308, %v309
        %v311 = vrot.slane %v310, 2
        %v312 = vmax.f32 %v310, %v311
        %v313 = vrot.slane %v312, 1
        %v314 = vmax.f32 %v312, %v313
        %v315 = vsel %vm293, %v288, -inf
        %v316 = vrot.slane %v315, 4
        %v317 = vmax.f32 %v315, %v316
        %v318 = vrot.slane %v317, 2
        %v319 = vmax.f32 %v317, %v318
        %v320 = vrot.slane %v319, 1
        %v321 = vmax.f32 %v319, %v320
        %v322 = vsel %vm293, %v289, -inf
        %v323 = vrot.slane %v322, 4
        %v324 = vmax.f32 %v322, %v323
        %v325 = vrot.slane %v324, 2
        %v326 = vmax.f32 %v324, %v325
        %v327 = vrot.slane %v326, 1
        %v328 = vmax.f32 %v326, %v327
        %v329 = vsel %vm293, %v290, -inf
        %v330 = vrot.slane %v329, 4
        %v331 = vmax.f32 %v329, %v330
        %v332 = vrot.slane %v331, 2
        %v333 = vmax.f32 %v331, %v332
        %v334 = vrot.slane %v333, 1
        %v335 = vmax.f32 %v333, %v334
        %v336 = vsel %vm293, %v291, -inf
        %v337 = vrot.slane %v336, 4
        %v338 = vmax.f32 %v336, %v337
        %v339 = vrot.slane %v338, 2
        %v340 = vmax.f32 %v338, %v339
        %v341 = vrot.slane %v340, 1
        %v342 = vmax.f32 %v340, %v341
        %v343 = vsel %vm293, %v292, -inf
        %v344 = vrot.slane %v343, 4
        %v345 = vmax.f32 %v343, %v344
        %v346 = vrot.slane %v345, 2
        %v347 = vmax.f32 %v345, %v346
        %v348 = vrot.slane %v347, 1
        %v349 = vmax.f32 %v347, %v348
        %v350 = vsub.f32 %v285, %v300
        %v351 = vsub.f32 %v286, %v307
        %v352 = vsub.f32 %v287, %v314
        %v353 = vsub.f32 %v288, %v321
        %v354 = vsub.f32 %v289, %v328
        %v355 = vsub.f32 %v290, %v335
        %v356 = vsub.f32 %v291, %v342
        %v357 = vsub.f32 %v292, %v349
        %v358 = vmul.f32 %v350, 1.442695
        %v359 = vpow.pop %v358
        %v360 = vmul.f32 %v351, 1.442695
        %v361 = vpow.pop %v360
        %v362 = vmul.f32 %v352, 1.442695
        %v363 = vpow.pop %v362
        %v364 = vmul.f32 %v353, 1.442695
        %v365 = vpow.pop %v364
        %v366 = vmul.f32 %v354, 1.442695
        %v367 = vpow.pop %v366
        %v368 = vmul.f32 %v355, 1.442695
        %v369 = vpow.pop %v368
        %v370 = vmul.f32 %v356, 1.442695
        %v371 = vpow.pop %v370
        %v372 = vmul.f32 %v357, 1.442695
        %v373 = vpow.pop %v372
        %v374 = vsel %vm293, %v359, 0.0
        %v375 = vrot.slane %v374, 4
        %v376 = vadd.f32 %v374, %v375
        %v377 = vrot.slane %v376, 2
        %v378 = vadd.f32 %v376, %v377
        %v379 = vrot.slane %v378, 1
        %v380 = vadd.f32 %v378, %v379
        %v381 = vsel %vm293, %v361, 0.0
        %v382 = vrot.slane %v381, 4
        %v383 = vadd.f32 %v381, %v382
        %v384 = vrot.slane %v383, 2
        %v385 = vadd.f32 %v383, %v384
        %v386 = vrot.slane %v385, 1
        %v387 = vadd.f32 %v385, %v386
        %v388 = vsel %vm293, %v363, 0.0
        %v389 = vrot.slane %v388, 4
        %v390 = vadd.f32 %v388, %v389
        %v391 = vrot.slane %v390, 2
        %v392 = vadd.f32 %v390, %v391
        %v393 = vrot.slane %v392, 1
        %v394 = vadd.f32 %v392, %v393
        %v395 = vsel %vm293, %v365, 0.0
        %v396 = vrot.slane %v395, 4
        %v397 = vadd.f32 %v395, %v396
        %v398 = vrot.slane %v397, 2
        %v399 = vadd.f32 %v397, %v398
        %v400 = vrot.slane %v399, 1
        %v401 = vadd.f32 %v399, %v400
        %v402 = vsel %vm293, %v367, 0.0
        %v403 = vrot.slane %v402, 4
        %v404 = vadd.f32 %v402, %v403
        %v405 = vrot.slane %v404, 2
        %v406 = vadd.f32 %v404, %v405
        %v407 = vrot.slane %v406, 1
        %v408 = vadd.f32 %v406, %v407
        %v409 = vsel %vm293, %v369, 0.0
        %v410 = vrot.slane %v409, 4
        %v411 = vadd.f32 %v409, %v410
        %v412 = vrot.slane %v411, 2
        %v413 = vadd.f32 %v411, %v412
        %v414 = vrot.slane %v413, 1
        %v415 = vadd.f32 %v413, %v414
        %v416 = vsel %vm293, %v371, 0.0
        %v417 = vrot.slane %v416, 4
        %v418 = vadd.f32 %v416, %v417
        %v419 = vrot.slane %v418, 2
        %v420 = vadd.f32 %v418, %v419
        %v421 = vrot.slane %v420, 1
        %v422 = vadd.f32 %v420, %v421
        %v423 = vsel %vm293, %v373, 0.0
        %v424 = vrot.slane %v423, 4
        %v425 = vadd.f32 %v423, %v424
        %v426 = vrot.slane %v425, 2
        %v427 = vadd.f32 %v425, %v426
        %v428 = vrot.slane %v427, 1
        %v429 = vadd.f32 %v427, %v428
        %v430 = vlog2.pop %v380
        %v431 = vmul.f32 %v430, 0.6931472
        %v432 = vlog2.pop %v387
        %v433 = vmul.f32 %v432, 0.6931472
        %v434 = vlog2.pop %v394
        %v435 = vmul.f32 %v434, 0.6931472
        %v436 = vlog2.pop %v401
        %v437 = vmul.f32 %v436, 0.6931472
        %v438 = vlog2.pop %v408
        %v439 = vmul.f32 %v438, 0.6931472
        %v440 = vlog2.pop %v415
        %v441 = vmul.f32 %v440, 0.6931472
        %v442 = vlog2.pop %v422
        %v443 = vmul.f32 %v442, 0.6931472
        %v444 = vlog2.pop %v429
        %v445 = vmul.f32 %v444, 0.6931472
        %v446 = vlaneseq
        %v447 = vshrl.u32 %v446, 7
        %v448 = vlaneseq
        %v449 = vshrl.u32 %v448, 7
        %v450 = vsub.s32 0, %v449
        %v451 = vrot.slane %v229, %v450
        %v452 = vlaneseq
        %v453 = vshrl.u32 %v452, 7
        %v454 = vsub.s32 1, %v453
        %v455 = vrot.slane %v229, %v454
        %v456 = vlaneseq
        %v457 = vshrl.u32 %v456, 7
        %v458 = vsub.s32 2, %v457
        %v459 = vrot.slane %v229, %v458
        %v460 = vlaneseq
        %v461 = vshrl.u32 %v460, 7
        %v462 = vsub.s32 3, %v461
        %v463 = vrot.slane %v229, %v462
        %v464 = vlaneseq
        %v465 = vshrl.u32 %v464, 7
        %v466 = vsub.s32 4, %v465
        %v467 = vrot.slane %v229, %v466
        %v468 = vlaneseq
        %v469 = vshrl.u32 %v468, 7
        %v470 = vsub.s32 5, %v469
        %v471 = vrot.slane %v229, %v470
        %v472 = vlaneseq
        %v473 = vshrl.u32 %v472, 7
        %v474 = vsub.s32 6, %v473
        %v475 = vrot.slane %v229, %v474
        %v476 = vlaneseq
        %v477 = vshrl.u32 %v476, 7
        %v478 = vsub.s32 7, %v477
        %v479 = vrot.slane %v229, %v478
        %vm480 = vcmp.eq.s32.totalorder %v447, %v451
        %vm481 = vcmp.eq.s32.totalorder %v447, %v455
        %vm482 = vcmp.eq.s32.totalorder %v447, %v459
        %vm483 = vcmp.eq.s32.totalorder %v447, %v463
        %vm484 = vcmp.eq.s32.totalorder %v447, %v467
        %vm485 = vcmp.eq.s32.totalorder %v447, %v471
        %vm486 = vcmp.eq.s32.totalorder %v447, %v475
        %vm487 = vcmp.eq.s32.totalorder %v447, %v479
        %v488 = vsel %vm480, %v350, 0.0
        %v489 = vsel %vm481, %v351, 0.0
        %v490 = vsel %vm482, %v352, 0.0
        %v491 = vsel %vm483, %v353, 0.0
        %v492 = vsel %vm484, %v354, 0.0
        %v493 = vsel %vm485, %v355, 0.0
        %v494 = vsel %vm486, %v356, 0.0
        %v495 = vsel %vm487, %v357, 0.0
        %v496 = vsel %vm293, %v488, 0.0
        %v497 = vrot.slane %v496, 4
        %v498 = vadd.f32 %v496, %v497
        %v499 = vrot.slane %v498, 2
        %v500 = vadd.f32 %v498, %v499
        %v501 = vrot.slane %v500, 1
        %v502 = vadd.f32 %v500, %v501
        %v503 = vsel %vm293, %v489, 0.0
        %v504 = vrot.slane %v503, 4
        %v505 = vadd.f32 %v503, %v504
        %v506 = vrot.slane %v505, 2
        %v507 = vadd.f32 %v505, %v506
        %v508 = vrot.slane %v507, 1
        %v509 = vadd.f32 %v507, %v508
        %v510 = vsel %vm293, %v490, 0.0
        %v511 = vrot.slane %v510, 4
        %v512 = vadd.f32 %v510, %v511
        %v513 = vrot.slane %v512, 2
        %v514 = vadd.f32 %v512, %v513
        %v515 = vrot.slane %v514, 1
        %v516 = vadd.f32 %v514, %v515
        %v517 = vsel %vm293, %v491, 0.0
        %v518 = vrot.slane %v517, 4
        %v519 = vadd.f32 %v517, %v518
        %v520 = vrot.slane %v519, 2
        %v521 = vadd.f32 %v519, %v520
        %v522 = vrot.slane %v521, 1
        %v523 = vadd.f32 %v521, %v522
        %v524 = vsel %vm293, %v492, 0.0
        %v525 = vrot.slane %v524, 4
        %v526 = vadd.f32 %v524, %v525
        %v527 = vrot.slane %v526, 2
        %v528 = vadd.f32 %v526, %v527
        %v529 = vrot.slane %v528, 1
        %v530 = vadd.f32 %v528, %v529
        %v531 = vsel %vm293, %v493, 0.0
        %v532 = vrot.slane %v531, 4
        %v533 = vadd.f32 %v531, %v532
        %v534 = vrot.slane %v533, 2
        %v535 = vadd.f32 %v533, %v534
        %v536 = vrot.slane %v535, 1
        %v537 = vadd.f32 %v535, %v536
        %v538 = vsel %vm293, %v494, 0.0
        %v539 = vrot.slane %v538, 4
        %v540 = vadd.f32 %v538, %v539
        %v541 = vrot.slane %v540, 2
        %v542 = vadd.f32 %v540, %v541
        %v543 = vrot.slane %v542, 1
        %v544 = vadd.f32 %v542, %v543
        %v545 = vsel %vm293, %v495, 0.0
        %v546 = vrot.slane %v545, 4
        %v547 = vadd.f32 %v545, %v546
        %v548 = vrot.slane %v547, 2
        %v549 = vadd.f32 %v547, %v548
        %v550 = vrot.slane %v549, 1
        %v551 = vadd.f32 %v549, %v550
        %vm552 = vcmp.ge.s32.totalorder %v229, 0
        %vm553 = vcmp.lt.s32.totalorder %v229, 4
        %vm554 = vmand %vm552, %vm553
        %v555 = vsel %vm554, 1, 0
        %v556 = vlaneseq
        %v557 = vshrl.u32 %v556, 7
        %v558 = vsub.s32 0, %v557
        %v559 = vrot.slane %v555, %v558
        %v560 = vlaneseq
        %v561 = vshrl.u32 %v560, 7
        %v562 = vsub.s32 1, %v561
        %v563 = vrot.slane %v555, %v562
        %v564 = vlaneseq
        %v565 = vshrl.u32 %v564, 7
        %v566 = vsub.s32 2, %v565
        %v567 = vrot.slane %v555, %v566
        %v568 = vlaneseq
        %v569 = vshrl.u32 %v568, 7
        %v570 = vsub.s32 3, %v569
        %v571 = vrot.slane %v555, %v570
        %v572 = vlaneseq
        %v573 = vshrl.u32 %v572, 7
        %v574 = vsub.s32 4, %v573
        %v575 = vrot.slane %v555, %v574
        %v576 = vlaneseq
        %v577 = vshrl.u32 %v576, 7
        %v578 = vsub.s32 5, %v577
        %v579 = vrot.slane %v555, %v578
        %v580 = vlaneseq
        %v581 = vshrl.u32 %v580, 7
        %v582 = vsub.s32 6, %v581
        %v583 = vrot.slane %v555, %v582
        %v584 = vlaneseq
        %v585 = vshrl.u32 %v584, 7
        %v586 = vsub.s32 7, %v585
        %v587 = vrot.slane %v555, %v586
        %vm588 = vcmp.ne.s32.totalorder %v559, 0
        %vm589 = vcmp.ne.s32.totalorder %v563, 0
        %vm590 = vcmp.ne.s32.totalorder %v567, 0
        %vm591 = vcmp.ne.s32.totalorder %v571, 0
        %vm592 = vcmp.ne.s32.totalorder %v575, 0
        %vm593 = vcmp.ne.s32.totalorder %v579, 0
        %vm594 = vcmp.ne.s32.totalorder %v583, 0
        %vm595 = vcmp.ne.s32.totalorder %v587, 0
        %vm596 = vmand %vm249, %vm588
        %vm597 = vmand %vm250, %vm589
        %vm598 = vmand %vm251, %vm590
        %vm599 = vmand %vm252, %vm591
        %vm600 = vmand %vm253, %vm592
        %vm601 = vmand %vm254, %vm593
        %vm602 = vmand %vm255, %vm594
        %vm603 = vmand %vm256, %vm595
        %v604 = vld [vmem:[#allocation2] sm:$0xff]
        %v605 = vsub.f32 %v431, %v502
        %v606 = vsub.f32 %v433, %v509
        %v607 = vsub.f32 %v435, %v516
        %v608 = vsub.f32 %v437, %v523
        %v609 = vsub.f32 %v439, %v530
        %v610 = vsub.f32 %v441, %v537
        %v611 = vsub.f32 %v443, %v544
        %v612 = vsub.f32 %v445, %v551
        %v613 = vsel %vm596, %v605, 0.0
        %v614 = vsel %vm597, %v606, 0.0
        %v615 = vsel %vm598, %v607, 0.0
        %v616 = vsel %vm599, %v608, 0.0
        %v617 = vsel %vm600, %v609, 0.0
        %v618 = vsel %vm601, %v610, 0.0
        %v619 = vsel %vm602, %v611, 0.0
        %v620 = vsel %vm603, %v612, 0.0
        %v629 = vcombine.low %v613, %v614
        %v630 = vcombine.low %v615, %v616
        %v631 = vcombine.low %v617, %v618
        %v632 = vcombine.low %v619, %v620
        %v634 = vunpack.c.l.s4 1966171168
        %v635 = vunpack.c.0.s8 %v634
        %v636 = vlaneseq
        %v637 = vshrl.u32 %v636, 7
        %v638 = vsub.s32 %v635, %v637
        %v639 = vrot.slane %v629, %v638
        %v641 = vunpack.c.l.s4 1966171168
        %v642 = vunpack.c.0.s8 %v641
        %v643 = vlaneseq
        %v644 = vshrl.u32 %v643, 7
        %v645 = vsub.s32 %v642, %v644
        %v646 = vrot.slane %v630, %v645
        %v648 = vunpack.c.l.s4 1966171168
        %v649 = vunpack.c.0.s8 %v648
        %v650 = vlaneseq
        %v651 = vshrl.u32 %v650, 7
        %v652 = vsub.s32 %v649, %v651
        %v653 = vrot.slane %v631, %v652
        %v655 = vunpack.c.l.s4 1966171168
        %v656 = vunpack.c.0.s8 %v655
        %v657 = vlaneseq
        %v658 = vshrl.u32 %v657, 7
        %v659 = vsub.s32 %v656, %v658
        %v660 = vrot.slane %v632, %v659
        %v661 = vcombine.low %v639, %v646
        %v662 = vcombine.low %v653, %v660
        %v664 = vunpack.c.l.s4 1966171168
        %v665 = vunpack.c.0.s8 %v664
        %v666 = vlaneseq
        %v667 = vshrl.u32 %v666, 7
        %v668 = vsub.s32 %v665, %v667
        %v669 = vrot.slane %v661, %v668
        %v671 = vunpack.c.l.s4 1966171168
        %v672 = vunpack.c.0.s8 %v671
        %v673 = vlaneseq
        %v674 = vshrl.u32 %v673, 7
        %v675 = vsub.s32 %v672, %v674
        %v676 = vrot.slane %v662, %v675
        %v677 = vcombine.low %v669, %v676
        %v679 = vadd.f32 %v604, %v677
        %680 = vst [vmem:[#allocation2] sm:$0xff] %v679
        // Predicated region
        $region41: #{tpu_custom_call.1} parent=27 // pred_check
          %p681 = pneg %p220
        $region42: #{tpu_custom_call.1} parent=27 // pred_check_branch
          %683 = sbr.rel (%p681) target = $region44
        $region43: #{tpu_custom_call.1} parent=27 // pred_region
          %v684 = vld [vmem:[#allocation2] sm:$0xff]
          %v686 = vlaneseq
          %v687 = vshrl.u32 %v686, 7
          %v688 = vsub.s32 0, %v687
          %v689 = vrot.slane %v684, %v688
          %v690 = vlaneseq
          %v691 = vshrl.u32 %v690, 7
          %v692 = vsub.s32 1, %v691
          %v693 = vrot.slane %v684, %v692
          %v694 = vlaneseq
          %v695 = vshrl.u32 %v694, 7
          %v696 = vsub.s32 2, %v695
          %v697 = vrot.slane %v684, %v696
          %v698 = vlaneseq
          %v699 = vshrl.u32 %v698, 7
          %v700 = vsub.s32 3, %v699
          %v701 = vrot.slane %v684, %v700
          %v702 = vlaneseq
          %v703 = vshrl.u32 %v702, 7
          %v704 = vsub.s32 4, %v703
          %v705 = vrot.slane %v684, %v704
          %v706 = vlaneseq
          %v707 = vshrl.u32 %v706, 7
          %v708 = vsub.s32 5, %v707
          %v709 = vrot.slane %v684, %v708
          %v710 = vlaneseq
          %v711 = vshrl.u32 %v710, 7
          %v712 = vsub.s32 6, %v711
          %v713 = vrot.slane %v684, %v712
          %v714 = vlaneseq
          %v715 = vshrl.u32 %v714, 7
          %v716 = vsub.s32 7, %v715
          %v717 = vrot.slane %v684, %v716
          %vm726 = vcmask 1040384
          %v727 = vsel %vm726, %v689, 0.0
          %v728 = vsel %vm726, %v693, 0.0
          %v729 = vadd.f32 %v727, %v728
          %v730 = vsel %vm726, %v697, 0.0
          %v731 = vadd.f32 %v729, %v730
          %v732 = vsel %vm726, %v701, 0.0
          %v733 = vadd.f32 %v731, %v732
          %v734 = vsel %vm726, %v705, 0.0
          %v735 = vadd.f32 %v733, %v734
          %v736 = vsel %vm726, %v709, 0.0
          %v737 = vadd.f32 %v735, %v736
          %v738 = vsel %vm726, %v713, 0.0
          %v739 = vadd.f32 %v737, %v738
          %v740 = vsel %vm726, %v717, 0.0
          %v741 = vadd.f32 %v739, %v740
          %742 = vadd.xlane.f32.xlu0 %v741
          %v743 = vpop.xlane.xlu0 %742
          %v744 = vrot.slane %v743, 4
          %v745 = vadd.f32 %v743, %v744
          %v746 = vrot.slane %v745, 2
          %v747 = vadd.f32 %v745, %v746
          %v748 = vrot.slane %v747, 1
          %v749 = vadd.f32 %v747, %v748
          %s750 = vtos %v749
          %v751 = vstv %s750
          %v752 = vadd.f32 %v751, 0.0
          %753 = vst [vmem:[%s217] sm:$0xff] %v752
        $region44: #{tpu_custom_call.1} parent=27 // pred_fallthru
          _
        %s754 = sand.u32 %s98, 1
        %s755 = scalar_lea.sflag [#allocation5], %s754
        %s756 = sand.u32 %s98, 1
        %s757 = smul.addr %s756, 8
        %s758 = scalar_lea.vmem [#allocation8], %s757
        // Predicated region
        $region45: #{tpu_custom_call.1} parent=27 // pred_check
          %p759 = pneg %p108
        $region46: #{tpu_custom_call.1} parent=27 // pred_check_branch
          %761 = sbr.rel (%p759) target = $region48
        $region47: #{tpu_custom_call.1} parent=27 // pred_region
          %s763 = ssub.s32 128, 128
          %764 = vsyncadd %s755, %s763
          %s765 = smul.addr %s26, 128
          %s766 = scalar_lea.hbm %s2, %s765
          %s768 = sshll.u32 %s758, 4
          %s769 = int_to_ptr.vmem [resolvable:$true] %s768
          %771 = dma.vmem_to_hbm [thread:$0]  %s769, 128, %s766, %s755
        $region48: #{tpu_custom_call.1} parent=27 // pred_fallthru
          _
      $region28: #{tpu_custom_call.1} parent=5 // pred_fallthru
        _
      %p772 = scmp.le.s32.totalorder 2, %s17
      // Predicated region
      $region49: #{tpu_custom_call.1} parent=5 // pred_check
        %p773 = pneg %p772
      $region50: #{tpu_custom_call.1} parent=5 // pred_check_branch
        %775 = sbr.rel (%p773) target = $region52
      $region51: #{tpu_custom_call.1} parent=5 // pred_region
        %s776 = ssub.s32 %s17, 2
        // Predicated region
        $region53: #{tpu_custom_call.1} parent=51 // pred_check
          %p777 = pneg %p114
        $region54: #{tpu_custom_call.1} parent=51 // pred_check_branch
          %779 = sbr.rel (%p777) target = $region56
        $region55: #{tpu_custom_call.1} parent=51 // pred_region
          %s780 = sand.u32 %s99, 1
          %s781 = scalar_lea.sflag [#allocation5], %s780
          %s782 = sand.u32 %s99, 1
          %s783 = smul.addr %s782, 8
          %s784 = scalar_lea.vmem [#allocation8], %s783
          %785 = dma.done %s781, 128
        $region56: #{tpu_custom_call.1} parent=51 // pred_fallthru
          _
      $region52: #{tpu_custom_call.1} parent=5 // pred_fallthru
        _
    $region6: #{tpu_custom_call.1} parent=1 // loop_footer
      %s21 = sadd.s32 1, %s17
    $region7: #{tpu_custom_call.1} parent=1 // loop_footer_branch
      %16 = sbr.rel target = $region3
    $region8: #{tpu_custom_call.1} parent=1 // loop_exit
      _
    %786 = vsyncpa [#allocation4], 1
    %s787 = scalar_lea.sflag [#allocation4], 1
    %788 = vsyncpa %s787, 1
    %789 = vsyncpa [#allocation7], 1
    %s790 = scalar_lea.sflag [#allocation7], 1
    %791 = vsyncpa %s790, 1
    %792 = vsyncpa [#allocation5], 1
    %s793 = scalar_lea.sflag [#allocation5], 1
    %794 = vsyncpa %s793, 1

</llo_original>
